<compile_context>
chip_gen: v5e
topology: v5e:2x2
jax: 0.10.0
libtpu: 0.0.40
codegen_flags: <defaults>
</compile_context>

<pallas_src>
import functools

import jax
import jax.numpy as jnp
from jax.experimental import pallas as pl
from jax.experimental.pallas import tpu as pltpu

OBS = 16     # observation_space_size
HID = 128    # hidden width of self.affine
ACT = 8      # action_space_size

MIN_TILE = 16       # sublane-aligned row tile (bf16-friendly: 16 rows)
MAX_BLOCK_M = 2048  # per-grid-step row cap; tiles stay far below the VMEM limit


def _policy_kernel(x_ref, w1_ref, b1_ref, w2_ref, b2_ref, o_ref):
    # x_ref : (TM, OBS)  bf16     w1_ref: (OBS, HID) bf16    b1_ref: (1, HID) f32
    # w2_ref: (HID, ACT) bf16     b2_ref: (1, ACT)   f32     o_ref : (TM, ACT) f32
    x = x_ref[...]

    # affine: x @ W1 + b1   (bf16 MXU matmul, f32 accumulation)
    h = jnp.dot(x, w1_ref[...], preferred_element_type=jnp.float32) + b1_ref[...]

    # dropout(p=0.6) in eval/inference mode == identity, then ReLU (VPU)
    # TODO(synk): training-mode stochastic dropout (pltpu.prng_seed +
    #             pltpu.prng_random_bits mask scaled by 1/(1-p)) is not applied.
    h = jnp.maximum(h, 0.0)

    # action_head: h @ W2 + b2  -> (TM, ACT) logits (narrow, no lane padding)
    logits = jnp.dot(h.astype(jnp.bfloat16), w2_ref[...],
                     preferred_element_type=jnp.float32) + b2_ref[...]

    # numerically stabilized per-row softmax with an EXACT divide so the
    # probabilities sum to 1 at f32 precision.  For a single observation this
    # matches PyTorch's softmax(dim=0) over the 1-D output vector.
    m = jnp.max(logits, axis=-1, keepdims=True)
    e = jnp.exp(logits - m)
    o_ref[...] = e / jnp.sum(e, axis=-1, keepdims=True)


def _round_up(x, m):
    return ((x + m - 1) // m) * m


def _bucket_rows(b):
    """Bucket the padded batch size to a small, fixed set of shapes so varying
    rollout batch sizes hit a handful of jit/Mosaic compiles at most."""
    b = max(b, MIN_TILE)
    if b <= MAX_BLOCK_M:
        return max(MIN_TILE, 1 << (b - 1).bit_length())   # 16, 32, ..., 2048
    return _round_up(b, MAX_BLOCK_M)                       # multiples of 2048


def _pick_block_m(b_pad):
    """Large tiles (short grid), but >=2 grid steps once the batch allows it so
    v7x's two TensorCores both get a share of the 'parallel' batch axis."""
    if b_pad < 2 * MIN_TILE:
        return b_pad
    return min(MAX_BLOCK_M, b_pad // 2)


@functools.partial(jax.jit, static_argnames=("block_m",))
def _policy_forward_padded(x_pad, w1, b1, w2, b2, *, block_m):
    b_pad = x_pad.shape[0]
    grid = (b_pad // block_m,)
    return pl.pallas_call(
        _policy_kernel,
        out_shape=jax.ShapeDtypeStruct((b_pad, ACT), jnp.float32),
        grid_spec=pltpu.PrefetchScalarGridSpec(
            num_scalar_prefetch=0,
            grid=grid,
            in_specs=[
                pl.BlockSpec((block_m, OBS), lambda i: (i, 0)),  # state tile
                pl.BlockSpec((OBS, HID), lambda i: (0, 0)),      # W1 (resident)
                pl.BlockSpec((1, HID), lambda i: (0, 0)),        # b1 (resident)
                pl.BlockSpec((HID, ACT), lambda i: (0, 0)),      # W2 (resident)
                pl.BlockSpec((1, ACT), lambda i: (0, 0)),        # b2 (resident)
            ],
            out_specs=pl.BlockSpec((block_m, ACT), lambda i: (i, 0)),
        ),
        compiler_params=pltpu.CompilerParams(
            # batch axis is embarrassingly parallel -> v7x megacore sharding
            dimension_semantics=("parallel",),
        ),
    )(x_pad, w1, b1, w2, b2)


def policy_forward_batch(states, w1, b1, w2, b2):
    """states: (B, OBS) -> per-row action probabilities (B, ACT) float32."""
    states = jnp.asarray(states, jnp.bfloat16)   # bf16 MXU operand, half the DMA
    b = states.shape[0]
    b_pad = _bucket_rows(b)
    if b_pad != b:
        states = jnp.pad(states, ((0, b_pad - b), (0, 0)))
    block_m = _pick_block_m(b_pad)
    out = _policy_forward_padded(states, w1, b1, w2, b2, block_m=block_m)
    return out[:b]


def policy_forward(state, w1, b1, w2, b2):
    """Single observation (OBS,) -> (ACT,): exact semantics of Model.forward."""
    return policy_forward_batch(jnp.reshape(state, (1, OBS)), w1, b1, w2, b2).reshape(ACT)


def init_params(key):
    """PyTorch-Linear-style init (uniform +/- 1/sqrt(fan_in)).

    Weights stored pre-transposed (in_features, out_features) in bf16 (MXU
    operands); biases stay f32 and pre-shaped (1, N) for the f32 epilogue.
    """
    k1, k2, k3, k4 = jax.random.split(key, 4)
    lim1 = 1.0 / jnp.sqrt(jnp.float32(OBS))
    lim2 = 1.0 / jnp.sqrt(jnp.float32(HID))
    w1 = jax.random.uniform(k1, (OBS, HID), jnp.float32, -lim1, lim1).astype(jnp.bfloat16)
    b1 = jax.random.uniform(k2, (1, HID), jnp.float32, -lim1, lim1)
    w2 = jax.random.uniform(k3, (HID, ACT), jnp.float32, -lim2, lim2).astype(jnp.bfloat16)
    b2 = jax.random.uniform(k4, (1, ACT), jnp.float32, -lim2, lim2)
    return w1, b1, w2, b2


if __name__ == "__main__":
    key = jax.random.PRNGKey(0)
    k_params, k_state, k_batch, k_batch2 = jax.random.split(key, 4)
    w1, b1, w2, b2 = init_params(k_params)

    def ref_fn(x):
        # mirrors the kernel's bf16-operand / f32-accumulate math
        xb = x.astype(jnp.bfloat16)
        h = jnp.dot(xb, w1, preferred_element_type=jnp.float32) + b1[0]
        h = jnp.maximum(h, 0.0)
        logits = jnp.dot(h.astype(jnp.bfloat16), w2,
                         preferred_element_type=jnp.float32) + b2[0]
        return jax.nn.softmax(logits, axis=-1)

    # --- single observation: matches Model.forward(state) / softmax(dim=0) ---
    state = jax.random.normal(k_state, (OBS,), jnp.float32)
    probs = jax.block_until_ready(policy_forward(state, w1, b1, w2, b2))
    ref = ref_fn(state)
    assert probs.shape == (ACT,)
    assert jnp.allclose(probs, ref, atol=2e-3, rtol=2e-3), (probs, ref)
    assert jnp.allclose(jnp.sum(probs), 1.0, atol=1e-3)

    # --- small batch (pads to one 16-row tile, single grid step) ---
    B1 = 12
    states1 = jax.random.normal(k_batch, (B1, OBS), jnp.float32)
    probs1 = jax.block_until_ready(policy_forward_batch(states1, w1, b1, w2, b2))
    ref1 = jax.vmap(ref_fn)(states1)
    assert probs1.shape == (B1, ACT)
    assert jnp.allclose(probs1, ref1, atol=2e-3, rtol=2e-3), (probs1, ref1)
    assert jnp.allclose(jnp.sum(probs1, axis=-1), 1.0, atol=1e-3)

    # --- medium batch (buckets to 64 rows, block_m=32 -> 2 grid steps) ---
    B2 = 40
    states2 = jax.random.normal(k_batch2, (B2, OBS), jnp.float32)
    probs2 = jax.block_until_ready(policy_forward_batch(states2, w1, b1, w2, b2))
    ref2 = jax.vmap(ref_fn)(states2)
    assert probs2.shape == (B2, ACT)
    assert jnp.allclose(probs2, ref2, atol=2e-3, rtol=2e-3), (probs2, ref2)
    assert jnp.allclose(jnp.sum(probs2, axis=-1), 1.0, atol=1e-3)

    print("KERNEL_OK")
</pallas_src>

<mosaic_0001>
module attributes {stable_mosaic.version = 11 : i64} {
  func.func @_policy_kernel(%arg0: i32, %arg1: memref<16x16xbf16, #tpu.memory_space<vmem>>, %arg2: memref<16x128xbf16, #tpu.memory_space<vmem>>, %arg3: memref<1x128xf32, #tpu.memory_space<vmem>>, %arg4: memref<128x8xbf16, #tpu.memory_space<vmem>>, %arg5: memref<1x8xf32, #tpu.memory_space<vmem>>, %arg6: memref<16x8xf32, #tpu.memory_space<vmem>>) attributes {dimension_semantics = [#tpu.dimension_semantics<parallel>], iteration_bounds = array<i64: 1>, scalar_prefetch = 0 : i64, scratch_operands = 0 : i64, tpu.core_type = #tpu.core_type<tc>, window_params = [{transform_indices = @transform_0, window_bounds = array<i64: 16, 16>}, {pipeline_mode = #tpu.pipeline_mode<synchronous>, transform_indices = @transform_1, window_bounds = array<i64: 16, 128>}, {pipeline_mode = #tpu.pipeline_mode<synchronous>, transform_indices = @transform_2, window_bounds = array<i64: 1, 128>}, {pipeline_mode = #tpu.pipeline_mode<synchronous>, transform_indices = @transform_3, window_bounds = array<i64: 128, 8>}, {pipeline_mode = #tpu.pipeline_mode<synchronous>, transform_indices = @transform_4, window_bounds = array<i64: 1, 8>}, {transform_indices = @transform_5, window_bounds = array<i64: 16, 8>}]} {
    %c0 = arith.constant 0 : index
    %c0_0 = arith.constant 0 : index
    %0 = vector.load %arg1[%c0, %c0_0] : memref<16x16xbf16, #tpu.memory_space<vmem>>, vector<16x16xbf16>
    %c0_1 = arith.constant 0 : index
    %c0_2 = arith.constant 0 : index
    %1 = vector.load %arg2[%c0_1, %c0_2] : memref<16x128xbf16, #tpu.memory_space<vmem>>, vector<16x128xbf16>
    %cst = arith.constant dense<0.000000e+00> : vector<16x128xf32>
    %2 = tpu.matmul %0, %1, %cst {dimension_numbers = #tpu.dot_dimension_numbers<[1], [0], [0], [1], [0, 0, 1, 1], [], []>} : vector<16x16xbf16>, vector<16x128xbf16>, vector<16x128xf32> -> vector<16x128xf32>
    %c0_3 = arith.constant 0 : index
    %c0_4 = arith.constant 0 : index
    %3 = vector.load %arg3[%c0_3, %c0_4] : memref<1x128xf32, #tpu.memory_space<vmem>>, vector<1x128xf32>
    %4 = vector.broadcast %3 : vector<1x128xf32> to vector<16x128xf32>
    %5 = arith.addf %2, %4 : vector<16x128xf32>
    %cst_5 = arith.constant 0.000000e+00 : f32
    %6 = vector.broadcast %cst_5 : f32 to vector<16x128xf32>
    %7 = arith.maximumf %5, %6 : vector<16x128xf32>
    %8 = arith.truncf %7 : vector<16x128xf32> to vector<16x128xbf16>
    %c0_6 = arith.constant 0 : index
    %c0_7 = arith.constant 0 : index
    %9 = vector.load %arg4[%c0_6, %c0_7] : memref<128x8xbf16, #tpu.memory_space<vmem>>, vector<128x8xbf16>
    %cst_8 = arith.constant dense<0.000000e+00> : vector<16x8xf32>
    %10 = tpu.matmul %8, %9, %cst_8 {dimension_numbers = #tpu.dot_dimension_numbers<[1], [0], [0], [1], [0, 0, 1, 1], [], []>} : vector<16x128xbf16>, vector<128x8xbf16>, vector<16x8xf32> -> vector<16x8xf32>
    %c0_9 = arith.constant 0 : index
    %c0_10 = arith.constant 0 : index
    %11 = vector.load %arg5[%c0_9, %c0_10] : memref<1x8xf32, #tpu.memory_space<vmem>>, vector<1x8xf32>
    %12 = vector.broadcast %11 : vector<1x8xf32> to vector<16x8xf32>
    %13 = arith.addf %10, %12 : vector<16x8xf32>
    %cst_11 = arith.constant dense<0xFF800000> : vector<16xf32>
    %14 = vector.multi_reduction <maximumf>, %13, %cst_11 [1] : vector<16x8xf32> to vector<16xf32>
    %15 = vector.shape_cast %14 : vector<16xf32> to vector<16x1xf32>
    %16 = vector.broadcast %15 : vector<16x1xf32> to vector<16x8xf32>
    %17 = arith.subf %13, %16 : vector<16x8xf32>
    %18 = math.exp %17 : vector<16x8xf32>
    %cst_12 = arith.constant dense<0.000000e+00> : vector<16xf32>
    %19 = vector.multi_reduction <add>, %18, %cst_12 [1] : vector<16x8xf32> to vector<16xf32>
    %20 = vector.shape_cast %19 : vector<16xf32> to vector<16x1xf32>
    %21 = vector.broadcast %20 : vector<16x1xf32> to vector<16x8xf32>
    %22 = arith.divf %18, %21 : vector<16x8xf32>
    %c0_13 = arith.constant 0 : index
    %c0_14 = arith.constant 0 : index
    %23 = vector.load %arg6[%c0_13, %c0_14] : memref<16x8xf32, #tpu.memory_space<vmem>>, vector<16x8xf32>
    tpu.vector_store %arg6[%c0_13, %c0_14], %22 {strides = array<i32>} : memref<16x8xf32, #tpu.memory_space<vmem>>, vector<16x8xf32>,
    return
  }
  func.func @transform_0(%arg0: i32) -> (i32, i32) {
    %c0_i32 = arith.constant 0 : i32
    %c0_i32_0 = arith.constant 0 : i32
    return %arg0, %c0_i32 : i32, i32
  }
  func.func @transform_1(%arg0: i32) -> (i32, i32) {
    %c0_i32 = arith.constant 0 : i32
    %c0_i32_0 = arith.constant 0 : i32
    %c0_i32_1 = arith.constant 0 : i32
    return %c0_i32, %c0_i32_0 : i32, i32
  }
  func.func @transform_2(%arg0: i32) -> (i32, i32) {
    %c0_i32 = arith.constant 0 : i32
    %c0_i32_0 = arith.constant 0 : i32
    %c0_i32_1 = arith.constant 0 : i32
    return %c0_i32, %c0_i32_0 : i32, i32
  }
  func.func @transform_3(%arg0: i32) -> (i32, i32) {
    %c0_i32 = arith.constant 0 : i32
    %c0_i32_0 = arith.constant 0 : i32
    %c0_i32_1 = arith.constant 0 : i32
    return %c0_i32, %c0_i32_0 : i32, i32
  }
  func.func @transform_4(%arg0: i32) -> (i32, i32) {
    %c0_i32 = arith.constant 0 : i32
    %c0_i32_0 = arith.constant 0 : i32
    %c0_i32_1 = arith.constant 0 : i32
    return %c0_i32, %c0_i32_0 : i32, i32
  }
  func.func @transform_5(%arg0: i32) -> (i32, i32) {
    %c0_i32 = arith.constant 0 : i32
    %c0_i32_0 = arith.constant 0 : i32
    return %arg0, %c0_i32 : i32, i32
  }
}

</mosaic_0001>

<llo_original>
// kernel: _policy_forward_padded.1
$region0: #{_policy_forward_padded.1}
  #allocation0 [shape = 'u32[]', space=smem, size = 0x4, offset = 0x4, fixed_abs, tag = 'smem constant byte address 0x4 - core index']
  #allocation1 [shape = 'u32[72,128]{1,0:T(1,128)}', space=vmem, size = 0x9000, scoped, tag = 'internal scratch']
  %s0 = inlined_call_operand.vmem [shape: bf16[16,16], index: 0, kind: input, shape index: {}]
  %s1 = inlined_call_operand.vmem [shape: bf16[16,128], index: 1, kind: input, shape index: {}]
  %s2 = inlined_call_operand.vmem [shape: f32[1,128], index: 2, kind: input, shape index: {}]
  %s3 = inlined_call_operand.vmem [shape: bf16[128,8], index: 3, kind: input, shape index: {}]
  %s4 = inlined_call_operand.vmem [shape: f32[1,8], index: 4, kind: input, shape index: {}]
  %s5 = inlined_call_operand.vmem [shape: f32[16,8], index: 5, kind: output, shape index: {}]
  %s6 = sld [smem:[#allocation0]]
  $region30: #{_policy_forward_padded.1} parent=0
    _
  %s8 = ssub.s32 1, %s6
  %s9 = scalar_select 0, %s8, %s6
  // Predicated region
  $region2: #{_policy_forward_padded.1} parent=0 // pred_check
    _
  $region3: #{_policy_forward_padded.1} parent=0 // pred_check_branch
    %11 = sbr.rel (0) target = $region5
  $region4: #{_policy_forward_padded.1} parent=0 // pred_region
    _
  $region5: #{_policy_forward_padded.1} parent=0 // pred_fallthru
    _
  // Predicated region
  $region6: #{_policy_forward_padded.1} parent=0 // pred_check
    _
  $region7: #{_policy_forward_padded.1} parent=0 // pred_check_branch
    %13 = sbr.rel (0) target = $region9
  $region8: #{_policy_forward_padded.1} parent=0 // pred_region
    _
  $region9: #{_policy_forward_padded.1} parent=0 // pred_fallthru
    _
  // Predicated region
  $region10: #{_policy_forward_padded.1} parent=0 // pred_check
    _
  $region11: #{_policy_forward_padded.1} parent=0 // pred_check_branch
    %15 = sbr.rel (0) target = $region13
  $region12: #{_policy_forward_padded.1} parent=0 // pred_region
    _
  $region13: #{_policy_forward_padded.1} parent=0 // pred_fallthru
    _
  // Predicated region
  $region14: #{_policy_forward_padded.1} parent=0 // pred_check
    _
  $region15: #{_policy_forward_padded.1} parent=0 // pred_check_branch
    %17 = sbr.rel (0) target = $region17
  $region16: #{_policy_forward_padded.1} parent=0 // pred_region
    _
  $region17: #{_policy_forward_padded.1} parent=0 // pred_fallthru
    _
  // Predicated region
  $region18: #{_policy_forward_padded.1} parent=0 // pred_check
    _
  $region19: #{_policy_forward_padded.1} parent=0 // pred_check_branch
    %19 = sbr.rel (0) target = $region21
  $region20: #{_policy_forward_padded.1} parent=0 // pred_region
    _
  $region21: #{_policy_forward_padded.1} parent=0 // pred_fallthru
    _
  %v21 = vld [vmem:[%s0] sm:$0xf]
  %v22 = vld [vmem:[%s0 + $0x4] sm:$0xf]
  %v23 = vld [vmem:[%s1] sm:$0xf]
  %v24 = vld [vmem:[%s1 + $0x4] sm:$0xf]
  %v25 = vld [vmem:[%s2] sm:$0x1]
  %v27 = vperm.slane %v25, 0
  %v31 = vunpack.c.l.b16 %v21
  %v32 = vunpack.c.l.b16 %v22
  %v33 = vpack.c.b16 %v32, %v31
  %v36 = vunpack.c.l.b16 %v23
  %v37 = vunpack.c.l.b16 %v24
  %v38 = vpack.c.b16 %v37, %v36
  %vm40 = vcmask 130048
  %v42 = vsel %vm40, %v33, 0
  %44 = vmatpush.bf16.msra.mxu0 0
  %45 = vmatpush.bf16.msra.mxu0 0
  %46 = vmatpush.bf16.msra.mxu0 0
  %47 = vmatpush.bf16.msra.mxu0 0
  %48 = vmatpush.bf16.msra.mxu0 0
  %49 = vmatpush.bf16.msra.mxu0 0
  %50 = vmatpush.bf16.msra.mxu0 0
  %51 = vmatpush.bf16.msra.mxu0 %v38
  %52 = vmatmul.bf16.gmra.mxu0 %v42
  %v53 = vpop.f32.mrf.mxu0
  %v54 = vadd.f32 %v27, %v53
  %v55 = vpop.f32.mrf.mxu0
  %v56 = vadd.f32 %v27, %v55
  %57 = vdwg.mxu0
  %v58 = vmax.f32 %v54, 0.0
  %v59 = vmax.f32 %v56, 0.0
  %v60 = vpack.c.bf16 %v59, %v58
  %v61 = vld [vmem:[%s3] sm:$0xf]
  %v62 = vld [vmem:[%s3 + $0x4] sm:$0xf]
  %v63 = vld [vmem:[%s3 + $0x8] sm:$0xf]
  %v64 = vld [vmem:[%s3 + $0xc] sm:$0xf]
  %v65 = vld [vmem:[%s3 + $0x10] sm:$0xf]
  %v66 = vld [vmem:[%s3 + $0x14] sm:$0xf]
  %v67 = vld [vmem:[%s3 + $0x18] sm:$0xf]
  %v68 = vld [vmem:[%s3 + $0x1c] sm:$0xf]
  %v69 = vld [vmem:[%s3 + $0x20] sm:$0xf]
  %v70 = vld [vmem:[%s3 + $0x24] sm:$0xf]
  %v71 = vld [vmem:[%s3 + $0x28] sm:$0xf]
  %v72 = vld [vmem:[%s3 + $0x2c] sm:$0xf]
  %v73 = vld [vmem:[%s3 + $0x30] sm:$0xf]
  %v74 = vld [vmem:[%s3 + $0x34] sm:$0xf]
  %v75 = vld [vmem:[%s3 + $0x38] sm:$0xf]
  %v76 = vld [vmem:[%s3 + $0x3c] sm:$0xf]
  %v77 = vld [vmem:[%s4] sm:$0x1]
  %v79 = vperm.slane %v77, 0
  %v97 = vunpack.c.l.b16 %v61
  %v98 = vunpack.c.l.b16 %v62
  %v99 = vunpack.c.l.b16 %v63
  %v100 = vunpack.c.l.b16 %v64
  %v101 = vunpack.c.l.b16 %v65
  %v102 = vunpack.c.l.b16 %v66
  %v103 = vunpack.c.l.b16 %v67
  %v104 = vunpack.c.l.b16 %v68
  %v105 = vunpack.c.l.b16 %v69
  %v106 = vunpack.c.l.b16 %v70
  %v107 = vunpack.c.l.b16 %v71
  %v108 = vunpack.c.l.b16 %v72
  %v109 = vunpack.c.l.b16 %v73
  %v110 = vunpack.c.l.b16 %v74
  %v111 = vunpack.c.l.b16 %v75
  %v112 = vunpack.c.l.b16 %v76
  %v113 = vpack.c.b16 %v98, %v97
  %v114 = vpack.c.b16 %v100, %v99
  %v115 = vpack.c.b16 %v102, %v101
  %v116 = vpack.c.b16 %v104, %v103
  %v117 = vpack.c.b16 %v106, %v105
  %v118 = vpack.c.b16 %v108, %v107
  %v119 = vpack.c.b16 %v110, %v109
  %v120 = vpack.c.b16 %v112, %v111
  %129 = vmatpush.bf16.msra.mxu0 %v120
  %130 = vmatpush.bf16.msra.mxu0 %v119
  %131 = vmatpush.bf16.msra.mxu0 %v118
  %132 = vmatpush.bf16.msra.mxu0 %v117
  %133 = vmatpush.bf16.msra.mxu0 %v116
  %134 = vmatpush.bf16.msra.mxu0 %v115
  %135 = vmatpush.bf16.msra.mxu0 %v114
  %136 = vmatpush.bf16.msra.mxu0 %v113
  %137 = vmatmul.bf16.gmra.mxu0 %v60
  %v138 = vpop.f32.mrf.mxu0
  %v139 = vadd.f32 %v79, %v138
  %v140 = vpop.f32.mrf.mxu0
  %v141 = vadd.f32 %v79, %v140
  %142 = vdwg.mxu0
  %vm143 = vcmask 64512
  %v144 = vsel %vm143, %v139, -inf
  %145 = vmax.xlane.f32.xlu0 %v144
  %v146 = vpop.xlane.xlu0 %145
  %v147 = vsel %vm143, %v141, -inf
  %148 = vmax.xlane.f32.xlu0 %v147
  %v149 = vpop.xlane.xlu0 %148
  %v150 = vsub.f32 %v139, %v146
  %v151 = vsub.f32 %v141, %v149
  %v152 = vmul.f32 %v150, 1.442695
  %v153 = vpow.pop %v152
  %v154 = vmul.f32 %v151, 1.442695
  %v155 = vpow.pop %v154
  %v156 = vsel %vm143, %v153, 0.0
  %157 = vadd.xlane.f32.xlu0 %v156
  %v158 = vpop.xlane.xlu0 %157
  %v159 = vsel %vm143, %v155, 0.0
  %160 = vadd.xlane.f32.xlu0 %v159
  %v161 = vpop.xlane.xlu0 %160
  %v162 = vrcp.pop %v158
  %v163 = vmul.f32 %v158, %v162
  %v164 = vsub.f32 1.0, %v163
  %v165 = vmul.f32 %v162, %v164
  %v166 = vadd.f32 %v162, %v165
  %vm167 = vweird.f32 %v158
  %vm168 = vweird.f32 %v162
  %vm169 = vmor %vm167, %vm168
  %v170 = vsel %vm169, %v162, %v166
  %v171 = vand.u32 2147483647, %v158
  %vm172 = vcmp.eq.f32.partialorder %v171, 8.507059e+37
  %v173 = vand.u32 %v158, 2147483648
  %v174 = vor.u32 1.1754944e-38, %v173
  %v175 = vsel %vm172, %v174, %v170
  %v176 = vmul.f32 %v153, %v175
  %v177 = vrcp.pop %v161
  %v178 = vmul.f32 %v161, %v177
  %v179 = vsub.f32 1.0, %v178
  %v180 = vmul.f32 %v177, %v179
  %v181 = vadd.f32 %v177, %v180
  %vm182 = vweird.f32 %v161
  %vm183 = vweird.f32 %v177
  %vm184 = vmor %vm182, %vm183
  %v185 = vsel %vm184, %v177, %v181
  %v186 = vand.u32 2147483647, %v161
  %vm187 = vcmp.eq.f32.partialorder %v186, 8.507059e+37
  %v188 = vand.u32 %v161, 2147483648
  %v189 = vor.u32 1.1754944e-38, %v188
  %v190 = vsel %vm187, %v189, %v185
  %v191 = vmul.f32 %v155, %v190
  %192 = vst.msk [vmem:[%s5] sm:$0xff] %vm143, %v176
  %193 = vst.msk [vmem:[%s5 + $0x8] sm:$0xff] %vm143, %v191
  // Predicated region
  $region22: #{_policy_forward_padded.1} parent=0 // pred_check
    _
  $region23: #{_policy_forward_padded.1} parent=0 // pred_check_branch
    %195 = sbr.rel (0) target = $region25
  $region24: #{_policy_forward_padded.1} parent=0 // pred_region
    _
  $region25: #{_policy_forward_padded.1} parent=0 // pred_fallthru
    _
  // Predicated region
  $region26: #{_policy_forward_padded.1} parent=0 // pred_check
    _
  $region27: #{_policy_forward_padded.1} parent=0 // pred_check_branch
    %197 = sbr.rel (0) target = $region29
  $region28: #{_policy_forward_padded.1} parent=0 // pred_region
    _
  $region29: #{_policy_forward_padded.1} parent=0 // pred_fallthru
    _

</llo_original>
